<compile_context>
chip_gen: v5e
topology: v5e:2x2
jax: 0.10.0
libtpu: 0.0.40
codegen_flags: <defaults>
</compile_context>

<pallas_src>
import jax
import jax.numpy as jnp
from jax import lax
from jax.experimental import pallas as pl
from jax.experimental.pallas import tpu as pltpu


def _biaffine_kernel(x_ref, w_ref, y_ref, wrow_ref, col_ref, o_ref, xw_ref):
    # x_ref:    (1, tx, Dx)     bf16 activations
    # w_ref:    (1, Dx, Dy)     bf16 weight core slice for this n_out
    # y_ref:    (1, ty, Dy)     bf16 activations
    # wrow_ref: (1, 1, Dy)      f32 bias_x row of W (zeros if bias_x=False)
    # col_ref:  (1, 1, tx, 1)   f32 precomputed bias_y column term (+corner)
    # o_ref:    (1, 1, tx, ty)  output tile
    # xw_ref:   (tx, Dy)        scratch: (x @ W[o] + w_row), reused over j

    @pl.when(pl.program_id(3) == 0)
    def _():
        xw = jnp.dot(x_ref[0], w_ref[0], preferred_element_type=jnp.float32)
        xw = xw + wrow_ref[0]                      # rank-1 VPU add (bias_x)
        xw_ref[...] = xw.astype(xw_ref.dtype)

    # (tx, Dy) x (ty, Dy), contracting the last dim of both -> no transpose.
    s = lax.dot_general(
        xw_ref[...], y_ref[0],
        dimension_numbers=(((1,), (1,)), ((), ())),
        preferred_element_type=jnp.float32)
    s = s + col_ref[0, 0]                          # rank-1 VPU add (bias_y)
    o_ref[0, 0] = s.astype(o_ref.dtype)


def biaffine_forward(x, y, weight, bias_x=True, bias_y=True,
                     compute_dtype=jnp.bfloat16, out_dtype=jnp.float32,
                     max_tile=512):
    """x: (B, Sx, n_in), y: (B, Sy, n_in), weight: (n_out, Dx, Dy).
    Returns (B, Sx, Sy, n_out), matching the PyTorch module."""
    B, Sx, dxc = x.shape
    By, Sy, dyc = y.shape
    assert By == B
    n_out = weight.shape[0]
    assert weight.shape == (n_out, dxc + int(bias_x), dyc + int(bias_y))

    # ---- split W: core + bias row / bias column / corner (no concat of x/y) --
    w_core = weight[:, :dxc, :dyc]
    if bias_x:
        w_row = weight[:, dxc, :dyc].astype(jnp.float32)
    else:
        w_row = jnp.zeros((n_out, dyc), jnp.float32)
    w_row = w_row[:, None, :]                               # (n_out, 1, Dy)

    if bias_y:
        col = jnp.einsum('bxd,od->box', x.astype(jnp.float32),
                         weight[:, :dxc, dyc].astype(jnp.float32))
        if bias_x:
            col = col + weight[:, dxc, dyc].astype(jnp.float32)[None, :, None]
    else:
        col = jnp.zeros((B, n_out, Sx), jnp.float32)
    col = col[..., None]                                    # (B, n_out, Sx, 1)

    # bf16 operands, f32 accumulation on the MXU
    x_c = x.astype(compute_dtype)
    y_c = y.astype(compute_dtype)
    w_c = w_core.astype(compute_dtype)

    tx = Sx if Sx <= max_tile else max_tile
    ty = Sy if Sy <= max_tile else max_tile
    grid = (B, n_out, pl.cdiv(Sx, tx), pl.cdiv(Sy, ty))

    out_bytes = B * n_out * Sx * Sy * jnp.dtype(out_dtype).itemsize
    cost = pl.CostEstimate(
        flops=int(2 * B * n_out * Sx * dyc * (dxc + Sy)),
        transcendentals=0,
        bytes_accessed=int(x_c.size * x_c.dtype.itemsize
                           + y_c.size * y_c.dtype.itemsize
                           + w_c.size * w_c.dtype.itemsize
                           + w_row.size * 4 + col.size * 4
                           + out_bytes))

    out = pl.pallas_call(
        _biaffine_kernel,
        out_shape=jax.ShapeDtypeStruct((B, n_out, Sx, Sy), out_dtype),
        grid_spec=pltpu.PrefetchScalarGridSpec(
            num_scalar_prefetch=0,
            grid=grid,
            in_specs=[
                pl.BlockSpec((1, tx, dxc), lambda b, o, i, j: (b, i, 0)),
                pl.BlockSpec((1, dxc, dyc), lambda b, o, i, j: (o, 0, 0)),
                pl.BlockSpec((1, ty, dyc), lambda b, o, i, j: (b, j, 0)),
                pl.BlockSpec((1, 1, dyc), lambda b, o, i, j: (o, 0, 0)),
                pl.BlockSpec((1, 1, tx, 1), lambda b, o, i, j: (b, o, i, 0)),
            ],
            out_specs=pl.BlockSpec((1, 1, tx, ty),
                                   lambda b, o, i, j: (b, o, i, j)),
            scratch_shapes=[pltpu.VMEM((tx, dyc), compute_dtype)],
        ),
        compiler_params=pltpu.CompilerParams(
            # j carries the xw scratch across Sy tiles -> "arbitrary";
            # b / o / i are independent -> "parallel" (megacore split on v7x).
            dimension_semantics=("parallel", "parallel", "parallel",
                                 "arbitrary")),
        cost_estimate=cost,
    )(x_c, w_c, y_c, w_row, col)

    # Module contract: s.permute(0, 2, 3, 1) -> (B, Sx, Sy, n_out).
    return jnp.transpose(out, (0, 2, 3, 1))


def make_weight(key, n_in, n_out, bias_x=True, bias_y=True):
    # Deterministic xavier-normal init matching the PyTorch shape
    # (n_out, n_in + bias_x, n_in + bias_y).
    dx = n_in + int(bias_x)
    dy = n_in + int(bias_y)
    fan_in = dx * dy
    fan_out = n_out * dy
    std = (2.0 / (fan_in + fan_out)) ** 0.5
    return std * jax.random.normal(key, (n_out, dx, dy), dtype=jnp.float32)


if __name__ == "__main__":
    key = jax.random.PRNGKey(0)
    k_x, k_y, k_w = jax.random.split(key, 3)

    B, S, n_in, n_out = 2, 8, 32, 3
    x = jax.random.normal(k_x, (B, S, n_in), dtype=jnp.float32)
    y = jax.random.normal(k_y, (B, S, n_in), dtype=jnp.float32)
    weight = make_weight(k_w, n_in, n_out, bias_x=True, bias_y=True)

    out = biaffine_forward(x, y, weight, bias_x=True, bias_y=True)
    out = jax.block_until_ready(out)

    # reference check (plain f32 JAX einsum, same semantics as torch);
    # kernel runs bf16 operands with f32 accumulation -> relaxed tolerance.
    xb = jnp.concatenate([x, jnp.ones_like(x[..., :1])], axis=-1)
    yb = jnp.concatenate([y, jnp.ones_like(y[..., :1])], axis=-1)
    ref = jnp.einsum('bxi,oij,byj->boxy', xb, weight, yb).transpose(0, 2, 3, 1)
    assert out.shape == (B, S, S, n_out)
    err = float(jnp.max(jnp.abs(out - ref)))
    assert jnp.allclose(out, ref, atol=3e-2, rtol=3e-2), f"max abs err={err}"

    print("KERNEL_OK")
</pallas_src>

<mosaic_0001>
module attributes {stable_mosaic.version = 11 : i64} {
  func.func @_biaffine_kernel(%arg0: i32, %arg1: i32, %arg2: i32, %arg3: i32, %arg4: memref<1x8x32xbf16, #tpu.memory_space<vmem>>, %arg5: memref<1x32x32xbf16, #tpu.memory_space<vmem>>, %arg6: memref<1x8x32xbf16, #tpu.memory_space<vmem>>, %arg7: memref<1x1x32xf32, #tpu.memory_space<vmem>>, %arg8: memref<1x1x8x1xf32, #tpu.memory_space<vmem>>, %arg9: memref<1x1x8x8xf32, #tpu.memory_space<vmem>>, %arg10: memref<8x32xbf16, #tpu.memory_space<vmem>>) attributes {dimension_semantics = [#tpu.dimension_semantics<parallel>, #tpu.dimension_semantics<parallel>, #tpu.dimension_semantics<parallel>, #tpu.dimension_semantics<arbitrary>], iteration_bounds = array<i64: 2, 3, 1, 1>, scalar_prefetch = 0 : i64, scratch_operands = 1 : i64, tpu.core_type = #tpu.core_type<tc>, window_params = [{transform_indices = @transform_0, window_bounds = array<i64: 1, 8, 32>}, {transform_indices = @transform_1, window_bounds = array<i64: 1, 32, 32>}, {transform_indices = @transform_2, window_bounds = array<i64: 1, 8, 32>}, {transform_indices = @transform_3, window_bounds = array<i64: 1, 1, 32>}, {transform_indices = @transform_4, window_bounds = array<i64: 1, 1, 8, 1>}, {transform_indices = @transform_5, window_bounds = array<i64: 1, 1, 8, 8>}]} {
    %c0_i32 = arith.constant 0 : i32
    %0 = arith.cmpi eq, %arg3, %c0_i32 : i32
    %1 = arith.extui %0 : i1 to i32
    %c0_i32_0 = arith.constant 0 : i32
    %2 = arith.cmpi ne, %1, %c0_i32_0 : i32
    scf.if %2 {
      %c0_13 = arith.constant 0 : index
      %c0_14 = arith.constant 0 : index
      %c0_15 = arith.constant 0 : index
      %14 = vector.load %arg4[%c0_13, %c0_14, %c0_15] : memref<1x8x32xbf16, #tpu.memory_space<vmem>>, vector<1x8x32xbf16>
      %15 = vector.shape_cast %14 : vector<1x8x32xbf16> to vector<8x32xbf16>
      %c0_16 = arith.constant 0 : index
      %c0_17 = arith.constant 0 : index
      %c0_18 = arith.constant 0 : index
      %16 = vector.load %arg5[%c0_16, %c0_17, %c0_18] : memref<1x32x32xbf16, #tpu.memory_space<vmem>>, vector<1x32x32xbf16>
      %17 = vector.shape_cast %16 : vector<1x32x32xbf16> to vector<32x32xbf16>
      %cst_19 = arith.constant dense<0.000000e+00> : vector<8x32xf32>
      %18 = tpu.matmul %15, %17, %cst_19 {dimension_numbers = #tpu.dot_dimension_numbers<[1], [0], [0], [1], [0, 0, 1, 1], [], []>} : vector<8x32xbf16>, vector<32x32xbf16>, vector<8x32xf32> -> vector<8x32xf32>
      %c0_20 = arith.constant 0 : index
      %c0_21 = arith.constant 0 : index
      %c0_22 = arith.constant 0 : index
      %19 = vector.load %arg7[%c0_20, %c0_21, %c0_22] : memref<1x1x32xf32, #tpu.memory_space<vmem>>, vector<1x1x32xf32>
      %20 = vector.shape_cast %19 : vector<1x1x32xf32> to vector<1x32xf32>
      %21 = vector.broadcast %20 : vector<1x32xf32> to vector<8x32xf32>
      %22 = arith.addf %18, %21 : vector<8x32xf32>
      %23 = arith.truncf %22 : vector<8x32xf32> to vector<8x32xbf16>
      %c0_23 = arith.constant 0 : index
      %c0_24 = arith.constant 0 : index
      %24 = vector.load %arg10[%c0_23, %c0_24] : memref<8x32xbf16, #tpu.memory_space<vmem>>, vector<8x32xbf16>
      tpu.vector_store %arg10[%c0_23, %c0_24], %23 {strides = array<i32>} : memref<8x32xbf16, #tpu.memory_space<vmem>>, vector<8x32xbf16>,
    } else {
    }
    %c0 = arith.constant 0 : index
    %c0_1 = arith.constant 0 : index
    %3 = vector.load %arg10[%c0, %c0_1] : memref<8x32xbf16, #tpu.memory_space<vmem>>, vector<8x32xbf16>
    %c0_2 = arith.constant 0 : index
    %c0_3 = arith.constant 0 : index
    %c0_4 = arith.constant 0 : index
    %4 = vector.load %arg6[%c0_2, %c0_3, %c0_4] : memref<1x8x32xbf16, #tpu.memory_space<vmem>>, vector<1x8x32xbf16>
    %5 = vector.shape_cast %4 : vector<1x8x32xbf16> to vector<8x32xbf16>
    %cst = arith.constant dense<0.000000e+00> : vector<8x8xf32>
    %6 = tpu.matmul %3, %5, %cst {dimension_numbers = #tpu.dot_dimension_numbers<[1], [1], [0], [0], [0, 0, 1, 0], [], []>} : vector<8x32xbf16>, vector<8x32xbf16>, vector<8x8xf32> -> vector<8x8xf32>
    %c0_5 = arith.constant 0 : index
    %c0_6 = arith.constant 0 : index
    %c0_7 = arith.constant 0 : index
    %c0_8 = arith.constant 0 : index
    %7 = vector.load %arg8[%c0_5, %c0_6, %c0_7, %c0_8] : memref<1x1x8x1xf32, #tpu.memory_space<vmem>>, vector<1x1x8x1xf32>
    %8 = vector.shape_cast %7 : vector<1x1x8x1xf32> to vector<8x1xf32>
    %9 = vector.broadcast %8 : vector<8x1xf32> to vector<8x8xf32>
    %10 = arith.addf %6, %9 : vector<8x8xf32>
    %c0_9 = arith.constant 0 : index
    %c0_10 = arith.constant 0 : index
    %c0_11 = arith.constant 0 : index
    %c0_12 = arith.constant 0 : index
    %11 = vector.load %arg9[%c0_9, %c0_10, %c0_11, %c0_12] : memref<1x1x8x8xf32, #tpu.memory_space<vmem>>, vector<1x1x8x8xf32>
    %12 = vector.shape_cast %11 : vector<1x1x8x8xf32> to vector<8x8xf32>
    %13 = vector.shape_cast %10 : vector<8x8xf32> to vector<1x1x8x8xf32>
    tpu.vector_store %arg9[%c0_9, %c0_10, %c0_11, %c0_12], %13 {strides = array<i32>} : memref<1x1x8x8xf32, #tpu.memory_space<vmem>>, vector<1x1x8x8xf32>,
    return
  }
  func.func @transform_0(%arg0: i32, %arg1: i32, %arg2: i32, %arg3: i32) -> (i32, i32, i32) {
    %c0_i32 = arith.constant 0 : i32
    %c0_i32_0 = arith.constant 0 : i32
    return %arg0, %arg2, %c0_i32 : i32, i32, i32
  }
  func.func @transform_1(%arg0: i32, %arg1: i32, %arg2: i32, %arg3: i32) -> (i32, i32, i32) {
    %c0_i32 = arith.constant 0 : i32
    %c0_i32_0 = arith.constant 0 : i32
    %c0_i32_1 = arith.constant 0 : i32
    return %arg1, %c0_i32, %c0_i32_0 : i32, i32, i32
  }
  func.func @transform_2(%arg0: i32, %arg1: i32, %arg2: i32, %arg3: i32) -> (i32, i32, i32) {
    %c0_i32 = arith.constant 0 : i32
    %c0_i32_0 = arith.constant 0 : i32
    return %arg0, %arg3, %c0_i32 : i32, i32, i32
  }
  func.func @transform_3(%arg0: i32, %arg1: i32, %arg2: i32, %arg3: i32) -> (i32, i32, i32) {
    %c0_i32 = arith.constant 0 : i32
    %c0_i32_0 = arith.constant 0 : i32
    %c0_i32_1 = arith.constant 0 : i32
    return %arg1, %c0_i32, %c0_i32_0 : i32, i32, i32
  }
  func.func @transform_4(%arg0: i32, %arg1: i32, %arg2: i32, %arg3: i32) -> (i32, i32, i32, i32) {
    %c0_i32 = arith.constant 0 : i32
    %c0_i32_0 = arith.constant 0 : i32
    return %arg0, %arg1, %arg2, %c0_i32 : i32, i32, i32, i32
  }
  func.func @transform_5(%arg0: i32, %arg1: i32, %arg2: i32, %arg3: i32) -> (i32, i32, i32, i32) {
    %c0_i32 = arith.constant 0 : i32
    return %arg0, %arg1, %arg2, %arg3 : i32, i32, i32, i32
  }
}

</mosaic_0001>

<llo_original>
// kernel: tpu_custom_call.1
$region0: #{tpu_custom_call.1}
  #allocation0 [shape = 'u32[]', space=smem, size = 0x4, offset = 0x4, fixed_abs, tag = 'smem constant byte address 0x4 - core index']
  #allocation1 [shape = 'u32[72,128]{1,0:T(1,128)}', space=vmem, size = 0x9000, scoped, tag = 'internal scratch']
  #allocation2 [shape = 'bf16[8,32]{1,0:T(8,128)(2,1)}', space=vmem, size = 0x800, scoped, tag = 'scratch operand']
  %s0 = inlined_call_operand.hbm [shape: bf16[2,8,32], index: 0, kind: input, shape index: {}]
  %s1 = inlined_call_operand.vmem [shape: bf16[3,32,32], index: 1, kind: input, shape index: {}]
  %s2 = inlined_call_operand.hbm [shape: bf16[2,8,32], index: 2, kind: input, shape index: {}]
  %s3 = inlined_call_operand.vmem [shape: f32[3,1,32], index: 3, kind: input, shape index: {}]
  %s4 = inlined_call_operand.vmem [shape: f32[2,3,8,1], index: 4, kind: input, shape index: {}]
  %s5 = inlined_call_operand.hbm [shape: f32[2,3,8,8], index: 5, kind: output, shape index: {}]
  %s6 = sld [smem:[#allocation0]]
  $region65: #{tpu_custom_call.1} parent=0
    _
  %s8 = ssub.s32 1, %s6
  %s9 = scalar_select 0, %s8, %s6
  $region1: #{tpu_custom_call.1} parent=0
    #allocation3 [shape = 'u8[4096]{0}', space=vmem, size = 0x1000, scoped, tag = 'input window, operand 0']
    #allocation4 [shape = 's32[2]{0}', space=sflag, size = 0x8, scoped, tag = 'scoped memory for tpu_custom_call.1']
    #allocation5 [shape = 's32[2]{0}', space=sflag, size = 0x8, scoped, tag = 'scoped memory for tpu_custom_call.1']
    #allocation6 [shape = 'u8[4096]{0}', space=vmem, size = 0x1000, scoped, tag = 'input window, operand 2']
    #allocation7 [shape = 's32[2]{0}', space=sflag, size = 0x8, scoped, tag = 'scoped memory for tpu_custom_call.1']
    #allocation8 [shape = 'u8[8192]{0}', space=vmem, size = 0x2000, scoped, tag = 'output window, operand 0']
    %10 = vsyncpa [#allocation4], 0
    %s11 = scalar_lea.sflag [#allocation4], 1
    %12 = vsyncpa %s11, 0
    %13 = vsyncpa [#allocation7], 0
    %s14 = scalar_lea.sflag [#allocation7], 1
    %15 = vsyncpa %s14, 0
    %16 = vsyncpa [#allocation5], 0
    %s17 = scalar_lea.sflag [#allocation5], 1
    %18 = vsyncpa %s17, 0
    loop: start=0, step=1, limit=8
    $region2: #{tpu_custom_call.1} parent=1 // loop_pre_header
      _
    $region3: #{tpu_custom_call.1} parent=1 // loop_header
      %s20 = sphi 0, %s24
      %p21 = scmp.ge.s32.totalorder %s20, 8
      %s27 = sphi 0, %s53
      %s28 = sphi 0, %s49
      %s29 = sphi 0, %s45
      %s30 = sphi 0, %s41
      %s31 = sphi 0, %s27
      %s32 = sphi 0, %s28
      %s33 = sphi 0, %s29
      %s34 = sphi 0, %s30
      %s35 = sphi 0, %s31
      %s36 = sphi 0, %s32
      %s37 = sphi 0, %s33
      %s38 = sphi 0, %s34
      %s58 = sphi 0, %s60
      %s61 = sphi 0, %s58
      %s62 = sphi 0, %s61
      %s78 = sphi 0, %s62
      %s84 = sphi 0, %s86
      %s87 = sphi 0, %s84
      %s88 = sphi 0, %s87
      %s104 = sphi 0, %s88
      %s112 = sphi 0, %s114
      %s115 = sphi 0, %s112
      %s116 = sphi 0, %s115
      %s132 = sphi 0, %s116
      %s138 = sphi 0, %s140
      %s141 = sphi 0, %s138
      %s142 = sphi 0, %s141
      %s158 = sphi 0, %s142
      %s168 = sphi 0, %s170
      %s171 = sphi 0, %s168
      %s172 = sphi 0, %s171
      %s188 = sphi 0, %s172
      %s200 = sphi 0, %s202
      %s203 = sphi 0, %s200
      %s204 = sphi 0, %s203
      %s220 = sphi 0, %s204
    $region4: #{tpu_custom_call.1} parent=1 // loop_header_branch
      %23 = sbr.rel (%p21) target = $region8
    $region5: #{tpu_custom_call.1} parent=1 // loop_body
      %s25 = ssub.s32 %s20, 1
      %s26 = ssub.s32 %s20, 2
      %s39 = sadd.s32 1, %s30
      %p40 = scmp.ge.s32.totalorder %s39, 1
      %s41 = scalar_select %p40, 0, %s39
      %s42 = sadd.s32 1, %s29
      %s43 = scalar_select %p40, %s42, %s29
      %p44 = scmp.ge.s32.totalorder %s43, 1
      %s45 = scalar_select %p44, 0, %s43
      %s46 = sadd.s32 1, %s28
      %s47 = scalar_select %p44, %s46, %s28
      %p48 = scmp.ge.s32.totalorder %s47, 3
      %s49 = scalar_select %p48, 0, %s47
      %s50 = sadd.s32 1, %s27
      %s51 = scalar_select %p48, %s50, %s27
      %p52 = scmp.ge.s32.totalorder %s51, 2
      %s53 = scalar_select %p52, 0, %s51
      %s54 = ssub.s32 %s27, %s53
      %s55 = ssub.s32 %s29, %s45
      %s56 = sor.u32 %s54, %s55
      %p57 = scmp.eq.s32.totalorder %s56, 0
      %s59 = sadd.s32 %s58, 1
      %s60 = scalar_select %p57, %s58, %s59
      %p63 = pneg %p57
      %p64 = scmp.eq.s32.totalorder %s20, 5
      %p65 = por %p63, %p64
      %p66 = scmp.ne.s32.totalorder %s58, %s61
      %p67 = scmp.eq.s32.totalorder %s20, 0
      %p68 = por %p66, %p67
      %p69 = scmp.ne.s32.totalorder %s58, %s61
      %p70 = scmp.eq.s32.totalorder %s25, 5
      %p71 = por %p69, %p70
      %p72 = scmp.ne.s32.totalorder %s61, %s62
      %p73 = scmp.eq.s32.totalorder %s25, 0
      %p74 = por %p72, %p73
      %p75 = scmp.ne.s32.totalorder %s61, %s62
      %p76 = scmp.eq.s32.totalorder %s26, 5
      %p77 = por %p75, %p76
      %p79 = scmp.ne.s32.totalorder %s62, %s78
      %p80 = scmp.eq.s32.totalorder %s26, 0
      %p81 = por %p79, %p80
      %s82 = ssub.s32 %s28, %s49
      %p83 = scmp.eq.s32.totalorder %s82, 0
      %s85 = sadd.s32 %s84, 1
      %s86 = scalar_select %p83, %s84, %s85
      %p89 = pneg %p83
      %p90 = scmp.eq.s32.totalorder %s20, 5
      %p91 = por %p89, %p90
      %p92 = scmp.ne.s32.totalorder %s84, %s87
      %p93 = scmp.eq.s32.totalorder %s20, 0
      %p94 = por %p92, %p93
      %p95 = scmp.ne.s32.totalorder %s84, %s87
      %p96 = scmp.eq.s32.totalorder %s25, 5
      %p97 = por %p95, %p96
      %p98 = scmp.ne.s32.totalorder %s87, %s88
      %p99 = scmp.eq.s32.totalorder %s25, 0
      %p100 = por %p98, %p99
      %p101 = scmp.ne.s32.totalorder %s87, %s88
      %p102 = scmp.eq.s32.totalorder %s26, 5
      %p103 = por %p101, %p102
      %p105 = scmp.ne.s32.totalorder %s88, %s104
      %p106 = scmp.eq.s32.totalorder %s26, 0
      %p107 = por %p105, %p106
      %s108 = ssub.s32 %s27, %s53
      %s109 = ssub.s32 %s30, %s41
      %s110 = sor.u32 %s108, %s109
      %p111 = scmp.eq.s32.totalorder %s110, 0
      %s113 = sadd.s32 %s112, 1
      %s114 = scalar_select %p111, %s112, %s113
      %p117 = pneg %p111
      %p118 = scmp.eq.s32.totalorder %s20, 5
      %p119 = por %p117, %p118
      %p120 = scmp.ne.s32.totalorder %s112, %s115
      %p121 = scmp.eq.s32.totalorder %s20, 0
      %p122 = por %p120, %p121
      %p123 = scmp.ne.s32.totalorder %s112, %s115
      %p124 = scmp.eq.s32.totalorder %s25, 5
      %p125 = por %p123, %p124
      %p126 = scmp.ne.s32.totalorder %s115, %s116
      %p127 = scmp.eq.s32.totalorder %s25, 0
      %p128 = por %p126, %p127
      %p129 = scmp.ne.s32.totalorder %s115, %s116
      %p130 = scmp.eq.s32.totalorder %s26, 5
      %p131 = por %p129, %p130
      %p133 = scmp.ne.s32.totalorder %s116, %s132
      %p134 = scmp.eq.s32.totalorder %s26, 0
      %p135 = por %p133, %p134
      %s136 = ssub.s32 %s28, %s49
      %p137 = scmp.eq.s32.totalorder %s136, 0
      %s139 = sadd.s32 %s138, 1
      %s140 = scalar_select %p137, %s138, %s139
      %p143 = pneg %p137
      %p144 = scmp.eq.s32.totalorder %s20, 5
      %p145 = por %p143, %p144
      %p146 = scmp.ne.s32.totalorder %s138, %s141
      %p147 = scmp.eq.s32.totalorder %s20, 0
      %p148 = por %p146, %p147
      %p149 = scmp.ne.s32.totalorder %s138, %s141
      %p150 = scmp.eq.s32.totalorder %s25, 5
      %p151 = por %p149, %p150
      %p152 = scmp.ne.s32.totalorder %s141, %s142
      %p153 = scmp.eq.s32.totalorder %s25, 0
      %p154 = por %p152, %p153
      %p155 = scmp.ne.s32.totalorder %s141, %s142
      %p156 = scmp.eq.s32.totalorder %s26, 5
      %p157 = por %p155, %p156
      %p159 = scmp.ne.s32.totalorder %s142, %s158
      %p160 = scmp.eq.s32.totalorder %s26, 0
      %p161 = por %p159, %p160
      %s162 = ssub.s32 %s27, %s53
      %s163 = ssub.s32 %s28, %s49
      %s164 = sor.u32 %s162, %s163
      %s165 = ssub.s32 %s29, %s45
      %s166 = sor.u32 %s164, %s165
      %p167 = scmp.eq.s32.totalorder %s166, 0
      %s169 = sadd.s32 %s168, 1
      %s170 = scalar_select %p167, %s168, %s169
      %p173 = pneg %p167
      %p174 = scmp.eq.s32.totalorder %s20, 5
      %p175 = por %p173, %p174
      %p176 = scmp.ne.s32.totalorder %s168, %s171
      %p177 = scmp.eq.s32.totalorder %s20, 0
      %p178 = por %p176, %p177
      %p179 = scmp.ne.s32.totalorder %s168, %s171
      %p180 = scmp.eq.s32.totalorder %s25, 5
      %p181 = por %p179, %p180
      %p182 = scmp.ne.s32.totalorder %s171, %s172
      %p183 = scmp.eq.s32.totalorder %s25, 0
      %p184 = por %p182, %p183
      %p185 = scmp.ne.s32.totalorder %s171, %s172
      %p186 = scmp.eq.s32.totalorder %s26, 5
      %p187 = por %p185, %p186
      %p189 = scmp.ne.s32.totalorder %s172, %s188
      %p190 = scmp.eq.s32.totalorder %s26, 0
      %p191 = por %p189, %p190
      %s192 = ssub.s32 %s27, %s53
      %s193 = ssub.s32 %s28, %s49
      %s194 = sor.u32 %s192, %s193
      %s195 = ssub.s32 %s29, %s45
      %s196 = sor.u32 %s194, %s195
      %s197 = ssub.s32 %s30, %s41
      %s198 = sor.u32 %s196, %s197
      %p199 = scmp.eq.s32.totalorder %s198, 0
      %s201 = sadd.s32 %s200, 1
      %s202 = scalar_select %p199, %s200, %s201
      %p205 = pneg %p199
      %p206 = scmp.eq.s32.totalorder %s20, 5
      %p207 = por %p205, %p206
      %p208 = scmp.ne.s32.totalorder %s200, %s203
      %p209 = scmp.eq.s32.totalorder %s20, 0
      %p210 = por %p208, %p209
      %p211 = scmp.ne.s32.totalorder %s200, %s203
      %p212 = scmp.eq.s32.totalorder %s25, 5
      %p213 = por %p211, %p212
      %p214 = scmp.ne.s32.totalorder %s203, %s204
      %p215 = scmp.eq.s32.totalorder %s25, 0
      %p216 = por %p214, %p215
      %p217 = scmp.ne.s32.totalorder %s203, %s204
      %p218 = scmp.eq.s32.totalorder %s26, 5
      %p219 = por %p217, %p218
      %p221 = scmp.ne.s32.totalorder %s204, %s220
      %p222 = scmp.eq.s32.totalorder %s26, 0
      %p223 = por %p221, %p222
      %p224 = scmp.le.s32.totalorder 1, %s20
      %p225 = scmp.lt.s32.totalorder %s20, 7
      %p226 = pnand %p224, %p225
      %p227 = pneg %p226
      // Predicated region
      $region9: #{tpu_custom_call.1} parent=5 // pred_check
        _
      $region10: #{tpu_custom_call.1} parent=5 // pred_check_branch
        %229 = sbr.rel (%p226) target = $region12
      $region11: #{tpu_custom_call.1} parent=5 // pred_region
        %s230 = ssub.s32 %s20, 1
      $region12: #{tpu_custom_call.1} parent=5 // pred_fallthru
        _
      %p231 = scmp.lt.s32.totalorder %s20, 6
      // Predicated region
      $region13: #{tpu_custom_call.1} parent=5 // pred_check
        %p232 = pneg %p231
      $region14: #{tpu_custom_call.1} parent=5 // pred_check_branch
        %234 = sbr.rel (%p232) target = $region16
      $region15: #{tpu_custom_call.1} parent=5 // pred_region
        // Predicated region
        $region17: #{tpu_custom_call.1} parent=15 // pred_check
          %p235 = pneg %p68
        $region18: #{tpu_custom_call.1} parent=15 // pred_check_branch
          %237 = sbr.rel (%p235) target = $region20
        $region19: #{tpu_custom_call.1} parent=15 // pred_region
          %s238 = sand.u32 %s58, 1
          %s239 = scalar_lea.sflag [#allocation4], %s238
          %s240 = sand.u32 %s58, 1
          %s241 = smul.addr %s240, 4
          %s242 = scalar_lea.vmem [#allocation3], %s241
          %244 = vsyncadd %s239, 0
          %s245 = sadd.s32 %s29, %s27
          %s246 = smul.addr %s245, 4
          %s247 = scalar_lea.hbm %s0, %s246
          %s249 = sshll.u32 %s247, 4
          %s250 = int_to_ptr.hbm [resolvable:$true] %s249
          %s251 = sshll.u32 %s242, 4
          %s252 = int_to_ptr.vmem [resolvable:$true] %s251
          %254 = dma.hbm_to_vmem [thread:$0]  %s250, 64, %s252, %s239
        $region20: #{tpu_custom_call.1} parent=15 // pred_fallthru
          _
        // Predicated region
        $region21: #{tpu_custom_call.1} parent=15 // pred_check
          %p255 = pneg %p94
        $region22: #{tpu_custom_call.1} parent=15 // pred_check_branch
          %257 = sbr.rel (%p255) target = $region24
        $region23: #{tpu_custom_call.1} parent=15 // pred_region
          %p258 = scmp.lt.s32.totalorder %s28, 2
          %s259 = scalar_select %p258, %s28, 2
          %s260 = smul.addr %s259, 4
          %s261 = smul.addr %s260, 4
          %s262 = scalar_lea.vmem %s1, %s261
        $region24: #{tpu_custom_call.1} parent=15 // pred_fallthru
          _
        // Predicated region
        $region25: #{tpu_custom_call.1} parent=15 // pred_check
          %p263 = pneg %p122
        $region26: #{tpu_custom_call.1} parent=15 // pred_check_branch
          %265 = sbr.rel (%p263) target = $region28
        $region27: #{tpu_custom_call.1} parent=15 // pred_region
          %s266 = sand.u32 %s112, 1
          %s267 = scalar_lea.sflag [#allocation7], %s266
          %s268 = sand.u32 %s112, 1
          %s269 = smul.addr %s268, 4
          %s270 = scalar_lea.vmem [#allocation6], %s269
          %272 = vsyncadd %s267, 0
          %s273 = sadd.s32 %s30, %s27
          %s274 = smul.addr %s273, 4
          %s275 = scalar_lea.hbm %s2, %s274
          %s277 = sshll.u32 %s275, 4
          %s278 = int_to_ptr.hbm [resolvable:$true] %s277
          %s279 = sshll.u32 %s270, 4
          %s280 = int_to_ptr.vmem [resolvable:$true] %s279
          %282 = dma.hbm_to_vmem [thread:$0]  %s278, 64, %s280, %s267
        $region28: #{tpu_custom_call.1} parent=15 // pred_fallthru
          _
        // Predicated region
        $region29: #{tpu_custom_call.1} parent=15 // pred_check
          %p283 = pneg %p148
        $region30: #{tpu_custom_call.1} parent=15 // pred_check_branch
          %285 = sbr.rel (%p283) target = $region32
        $region31: #{tpu_custom_call.1} parent=15 // pred_region
          %p286 = scmp.lt.s32.totalorder %s28, 2
          %s287 = scalar_select %p286, %s28, 2
          %s288 = scalar_lea.vmem %s3, %s287
        $region32: #{tpu_custom_call.1} parent=15 // pred_fallthru
          _
        // Predicated region
        $region33: #{tpu_custom_call.1} parent=15 // pred_check
          %p289 = pneg %p178
        $region34: #{tpu_custom_call.1} parent=15 // pred_check_branch
          %291 = sbr.rel (%p289) target = $region36
        $region35: #{tpu_custom_call.1} parent=15 // pred_region
          %p292 = scmp.lt.s32.totalorder %s27, 1
          %s293 = scalar_select %p292, %s27, 1
          %p294 = scmp.lt.s32.totalorder %s28, 2
          %s295 = scalar_select %p294, %s28, 2
          %p296 = scmp.lt.s32.totalorder %s29, 0
          %s297 = scalar_select %p296, %s29, 0
          %s298 = sadd.s32 %s297, %s295
          %s299 = smul.addr %s293, 3
          %s300 = sadd.s32 %s298, %s299
          %s301 = smul.addr %s300, 8
          %s302 = scalar_lea.vmem %s4, %s301
        $region36: #{tpu_custom_call.1} parent=15 // pred_fallthru
          _
      $region16: #{tpu_custom_call.1} parent=5 // pred_fallthru
        _
      %p303 = scmp.le.s32.totalorder 1, %s20
      %p304 = scmp.lt.s32.totalorder %s20, 7
      %p305 = pnand %p303, %p304
      %p306 = pneg %p305
      // Predicated region
      $region37: #{tpu_custom_call.1} parent=5 // pred_check
        _
      $region38: #{tpu_custom_call.1} parent=5 // pred_check_branch
        %308 = sbr.rel (%p305) target = $region40
      $region39: #{tpu_custom_call.1} parent=5 // pred_region
        %s309 = ssub.s32 %s20, 1
        %s310 = sand.u32 %s61, 1
        %s311 = scalar_lea.sflag [#allocation4], %s310
        %s312 = sand.u32 %s61, 1
        %s313 = smul.addr %s312, 4
        %s314 = scalar_lea.vmem [#allocation3], %s313
        // Predicated region
        $region41: #{tpu_custom_call.1} parent=39 // pred_check
          %p315 = pneg %p74
        $region42: #{tpu_custom_call.1} parent=39 // pred_check_branch
          %317 = sbr.rel (%p315) target = $region44
        $region43: #{tpu_custom_call.1} parent=39 // pred_region
          %319 = dma.done %s311, 64
        $region44: #{tpu_custom_call.1} parent=39 // pred_fallthru
          _
        %s320 = sand.u32 %s115, 1
        %s321 = scalar_lea.sflag [#allocation7], %s320
        %s322 = sand.u32 %s115, 1
        %s323 = smul.addr %s322, 4
        %s324 = scalar_lea.vmem [#allocation6], %s323
        // Predicated region
        $region45: #{tpu_custom_call.1} parent=39 // pred_check
          %p325 = pneg %p128
        $region46: #{tpu_custom_call.1} parent=39 // pred_check_branch
          %327 = sbr.rel (%p325) target = $region48
        $region47: #{tpu_custom_call.1} parent=39 // pred_region
          %329 = dma.done %s321, 64
        $region48: #{tpu_custom_call.1} parent=39 // pred_fallthru
          _
        %s330 = sand.u32 %s61, 1
        %s331 = scalar_lea.sflag [#allocation4], %s330
        %s332 = sand.u32 %s61, 1
        %s333 = smul.addr %s332, 4
        %s334 = scalar_lea.vmem [#allocation3], %s333
        %p335 = pneg %p74
        %p336 = pneg %p71
        %p337 = scmp.lt.s32.totalorder %s32, 2
        %s338 = scalar_select %p337, %s32, 2
        %s339 = smul.addr %s338, 4
        %s340 = smul.addr %s339, 4
        %s341 = scalar_lea.vmem %s1, %s340
        %p342 = pneg %p100
        %p343 = pneg %p97
        %s344 = sand.u32 %s115, 1
        %s345 = scalar_lea.sflag [#allocation7], %s344
        %s346 = sand.u32 %s115, 1
        %s347 = smul.addr %s346, 4
        %s348 = scalar_lea.vmem [#allocation6], %s347
        %p349 = pneg %p128
        %p350 = pneg %p125
        %p351 = scmp.lt.s32.totalorder %s32, 2
        %s352 = scalar_select %p351, %s32, 2
        %s353 = scalar_lea.vmem %s3, %s352
        %p354 = pneg %p154
        %p355 = pneg %p151
        %p356 = scmp.lt.s32.totalorder %s31, 1
        %s357 = scalar_select %p356, %s31, 1
        %p358 = scmp.lt.s32.totalorder %s32, 2
        %s359 = scalar_select %p358, %s32, 2
        %p360 = scmp.lt.s32.totalorder %s33, 0
        %s361 = scalar_select %p360, %s33, 0
        %s362 = sadd.s32 %s361, %s359
        %s363 = smul.addr %s357, 3
        %s364 = sadd.s32 %s362, %s363
        %s365 = smul.addr %s364, 8
        %s366 = scalar_lea.vmem %s4, %s365
        %p367 = pneg %p184
        %p368 = pneg %p181
        %p369 = pneg %p216
        %p370 = pneg %p213
        %s371 = sand.u32 %s203, 1
        %s372 = scalar_lea.sflag [#allocation5], %s371
        %s373 = sand.u32 %s203, 1
        %s374 = smul.addr %s373, 8
        %s375 = scalar_lea.vmem [#allocation8], %s374
        %p376 = scmp.lt.s32.totalorder %s32, 2
        %s377 = scalar_select %p376, %s32, 2
        %s378 = smul.addr %s377, 4
        %s379 = smul.addr %s378, 4
        %s380 = scalar_lea.vmem %s1, %s379
        %p381 = scmp.lt.s32.totalorder %s32, 2
        %s382 = scalar_select %p381, %s32, 2
        %s383 = scalar_lea.vmem %s3, %s382
        %p384 = scmp.lt.s32.totalorder %s31, 1
        %s385 = scalar_select %p384, %s31, 1
        %p386 = scmp.lt.s32.totalorder %s32, 2
        %s387 = scalar_select %p386, %s32, 2
        %p388 = scmp.lt.s32.totalorder %s33, 0
        %s389 = scalar_select %p388, %s33, 0
        %s390 = sadd.s32 %s389, %s387
        %s391 = smul.addr %s385, 3
        %s392 = sadd.s32 %s390, %s391
        %s393 = smul.addr %s392, 8
        %s394 = scalar_lea.vmem %s4, %s393
        %p396 = scmp.eq.s32.totalorder %s34, 0
        // Predicated region
        $region49: #{tpu_custom_call.1} parent=39 // pred_check
          %p397 = pneg %p396
        $region50: #{tpu_custom_call.1} parent=39 // pred_check_branch
          %399 = sbr.rel (%p397) target = $region52
        $region51: #{tpu_custom_call.1} parent=39 // pred_region
          %v400 = vld [vmem:[%s314] sm:$0xf]
          %v401 = vld [vmem:[%s380] sm:$0xf]
          %v402 = vld [vmem:[%s380 + $0x4] sm:$0xf]
          %v403 = vld [vmem:[%s380 + $0x8] sm:$0xf]
          %v404 = vld [vmem:[%s380 + $0xc] sm:$0xf]
          %v405 = vld [vmem:[%s383] sm:$0x1]
          %v407 = vperm.slane %v405, 0
          %v413 = vunpack.c.l.b16 %v401
          %v414 = vunpack.c.l.b16 %v402
          %v415 = vunpack.c.l.b16 %v403
          %v416 = vunpack.c.l.b16 %v404
          %v417 = vpack.c.b16 %v414, %v413
          %v418 = vpack.c.b16 %v416, %v415
          %vm421 = vcmask 261120
          %v423 = vsel %vm421, %v400, 0
          %425 = vmatpush.bf16.msra.mxu0 0
          %426 = vmatpush.bf16.msra.mxu0 0
          %427 = vmatpush.bf16.msra.mxu0 0
          %428 = vmatpush.bf16.msra.mxu0 0
          %429 = vmatpush.bf16.msra.mxu0 0
          %430 = vmatpush.bf16.msra.mxu0 0
          %431 = vmatpush.bf16.msra.mxu0 %v418
          %432 = vmatpush.bf16.msra.mxu0 %v417
          %433 = vmatmul.bf16.gmra.mxu0 %v423
          %v434 = vpop.f32.mrf.mxu0
          %v435 = vadd.f32 %v407, %v434
          %v436 = vpop.f32.mrf.mxu0
          %437 = vdwg.mxu0
          %v438 = vpack.c.bf16 %v435, %v435
          %vm439 = vcmask 257024
          %440 = vst.msk [vmem:[#allocation2] sm:$0xf] %vm439, %v438
        $region52: #{tpu_custom_call.1} parent=39 // pred_fallthru
          _
        %v441 = vld [vmem:[#allocation2] sm:$0xf]
        %v442 = vld [vmem:[%s324] sm:$0xf]
        %v443 = vld [vmem:[%s394] sm:$0xff]
        %445 = vset.pattern.permute.xlu0 0
        %446 = vperm.xlu0 %445, %v443
        %v447 = vpop.permute.xlu0 %446
        %vm449 = vcmask 261120
        %v451 = vsel %vm449, %v441, 0
        %v454 = vsel %vm449, %v442, 0
        %456 = vmatpush.bf16.xpose.msra.mxu0 0
        %457 = vmatpush.bf16.xpose.msra.mxu0 0
        %458 = vmatpush.bf16.xpose.msra.mxu0 0
        %459 = vmatpush.bf16.xpose.msra.mxu0 0
        %460 = vmatpush.bf16.xpose.msra.mxu0 0
        %461 = vmatpush.bf16.xpose.msra.mxu0 0
        %462 = vmatpush.bf16.xpose.msra.mxu0 0
        %463 = vmatpush.bf16.xpose.msra.mxu0 %v454
        %464 = vmatmul.bf16.gmra.mxu0 %v451
        %v465 = vpop.f32.mrf.mxu0
        %v466 = vadd.f32 %v447, %v465
        %v467 = vpop.f32.mrf.mxu0
        %468 = vdwg.mxu0
        %vm469 = vcmask 64512
        %470 = vst.msk [vmem:[%s375] sm:$0xff] %vm469, %v466
        %s471 = sand.u32 %s203, 1
        %s472 = scalar_lea.sflag [#allocation5], %s471
        %s473 = sand.u32 %s203, 1
        %s474 = smul.addr %s473, 8
        %s475 = scalar_lea.vmem [#allocation8], %s474
        // Predicated region
        $region53: #{tpu_custom_call.1} parent=39 // pred_check
          %p476 = pneg %p213
        $region54: #{tpu_custom_call.1} parent=39 // pred_check_branch
          %478 = sbr.rel (%p476) target = $region56
        $region55: #{tpu_custom_call.1} parent=39 // pred_region
          %480 = vsyncadd %s472, 0
          %s481 = sadd.s32 %s34, %s33
          %s482 = sadd.s32 %s481, %s32
          %s483 = smul.addr %s31, 3
          %s484 = sadd.s32 %s482, %s483
          %s485 = smul.addr %s484, 8
          %s486 = scalar_lea.hbm %s5, %s485
          %s488 = sshll.u32 %s475, 4
          %s489 = int_to_ptr.vmem [resolvable:$true] %s488
          %s490 = sshll.u32 %s486, 4
          %s491 = int_to_ptr.hbm [resolvable:$true] %s490
          %493 = dma.vmem_to_hbm [thread:$0]  %s489, 128, %s491, %s472
        $region56: #{tpu_custom_call.1} parent=39 // pred_fallthru
          _
      $region40: #{tpu_custom_call.1} parent=5 // pred_fallthru
        _
      %p494 = scmp.le.s32.totalorder 2, %s20
      // Predicated region
      $region57: #{tpu_custom_call.1} parent=5 // pred_check
        %p495 = pneg %p494
      $region58: #{tpu_custom_call.1} parent=5 // pred_check_branch
        %497 = sbr.rel (%p495) target = $region60
      $region59: #{tpu_custom_call.1} parent=5 // pred_region
        %s498 = ssub.s32 %s20, 2
        // Predicated region
        $region61: #{tpu_custom_call.1} parent=59 // pred_check
          %p499 = pneg %p219
        $region62: #{tpu_custom_call.1} parent=59 // pred_check_branch
          %501 = sbr.rel (%p499) target = $region64
        $region63: #{tpu_custom_call.1} parent=59 // pred_region
          %s502 = sand.u32 %s204, 1
          %s503 = scalar_lea.sflag [#allocation5], %s502
          %s504 = sand.u32 %s204, 1
          %s505 = smul.addr %s504, 8
          %s506 = scalar_lea.vmem [#allocation8], %s505
          %508 = dma.done %s503, 128
        $region64: #{tpu_custom_call.1} parent=59 // pred_fallthru
          _
      $region60: #{tpu_custom_call.1} parent=5 // pred_fallthru
        _
    $region6: #{tpu_custom_call.1} parent=1 // loop_footer
      %s24 = sadd.s32 1, %s20
    $region7: #{tpu_custom_call.1} parent=1 // loop_footer_branch
      %19 = sbr.rel target = $region3
    $region8: #{tpu_custom_call.1} parent=1 // loop_exit
      _
    %509 = vsyncpa [#allocation4], 1
    %s510 = scalar_lea.sflag [#allocation4], 1
    %511 = vsyncpa %s510, 1
    %512 = vsyncpa [#allocation7], 1
    %s513 = scalar_lea.sflag [#allocation7], 1
    %514 = vsyncpa %s513, 1
    %515 = vsyncpa [#allocation5], 1
    %s516 = scalar_lea.sflag [#allocation5], 1
    %517 = vsyncpa %s516, 1

</llo_original>
